<compile_context>
chip_gen: v7x
topology: tpu7x:2x2x1
jax: 0.10.0
libtpu: 0.0.40
codegen_flags: <defaults>
</compile_context>

<pallas_src>
import functools

import jax
import jax.numpy as jnp
from jax.experimental import pallas as pl
from jax.experimental.pallas import tpu as pltpu

EPS = 1e-6
NUM_GROUPS = 32


# ---------------------------------------------------------------------------
# Stage 1: GroupNorm statistics -> per-channel scale/shift.  grid = (B, HW tiles)
# ---------------------------------------------------------------------------
def gn_stats_kernel(x_ref, gamma_ref, beta_ref, gmap_ref, gmapt_ref,
                    scale_ref, shift_ref, sum_sc, sumsq_sc, *, inv_n):
    t = pl.program_id(1)

    @pl.when(t == 0)
    def _():
        sum_sc[...] = jnp.zeros_like(sum_sc)
        sumsq_sc[...] = jnp.zeros_like(sumsq_sc)

    x = x_ref[0]                                      # (THW, C) f32
    ones = jnp.ones((1, x.shape[0]), jnp.float32)
    # Column sums on the MXU instead of a long sublane/XLU reduction.
    sum_sc[...] += jnp.dot(ones, x, preferred_element_type=jnp.float32)
    sumsq_sc[...] += jnp.dot(ones, x * x, preferred_element_type=jnp.float32)

    @pl.when(t == pl.num_programs(1) - 1)
    def _():
        gmap = gmap_ref[...]                          # (C, G) one-hot channel->group
        gmapt = gmapt_ref[...]                        # (G, C) pre-transposed (no XLU transpose)
        sum_g = jnp.dot(sum_sc[...], gmap, preferred_element_type=jnp.float32)
        sumsq_g = jnp.dot(sumsq_sc[...], gmap, preferred_element_type=jnp.float32)
        mean_g = sum_g * inv_n
        # clamp: single-pass variance can go slightly negative from cancellation
        var_g = jnp.maximum(sumsq_g * inv_n - mean_g * mean_g, 0.0)
        rstd_g = jax.lax.rsqrt(var_g + EPS)
        mean_c = jnp.dot(mean_g, gmapt, preferred_element_type=jnp.float32)   # (1, C)
        rstd_c = jnp.dot(rstd_g, gmapt, preferred_element_type=jnp.float32)   # (1, C)
        scale = rstd_c * gamma_ref[...]
        scale_ref[0] = scale
        shift_ref[0] = beta_ref[...] - mean_c * scale


# ---------------------------------------------------------------------------
# Stage 2: normalize + fused QKV 1x1 conv (bf16 MXU).  grid = (B, HW tiles)
# ---------------------------------------------------------------------------
def gn_qkv_kernel(x_ref, scale_ref, shift_ref, wqkv_ref, bqkv_ref, qkv_ref):
    x = x_ref[0]                                      # (THW, C) f32
    h = x * scale_ref[0] + shift_ref[0]               # GroupNorm applied, f32
    h16 = h.astype(jnp.bfloat16)
    qkv = jnp.dot(h16, wqkv_ref[...],
                  preferred_element_type=jnp.float32) + bqkv_ref[...]   # (THW, 3C) f32
    # Single lane-dense (THW, 3C) bf16 store (q already scaled by C**-0.5 via wqkv).
    qkv_ref[0] = qkv.astype(jnp.bfloat16)


# ---------------------------------------------------------------------------
# Stage 3: flash attention + proj_out + residual.  grid = (B, q_tiles, k_tiles)
# ---------------------------------------------------------------------------
def flash_attn_kernel(q_ref, k_ref, v_ref, x_ref, wp_ref, bp_ref,
                      o_ref, m_sc, l_sc, acc_sc):
    ki = pl.program_id(2)

    @pl.when(ki == 0)
    def _():
        m_sc[...] = jnp.full_like(m_sc, -jnp.inf)
        l_sc[...] = jnp.zeros_like(l_sc)
        acc_sc[...] = jnp.zeros_like(acc_sc)

    q = q_ref[0]                                      # (TQ, C) bf16 (pre-scaled)
    k = k_ref[0]                                      # (TK, C) bf16
    # contraction over last dims without materializing k.T (no XLU transpose copy)
    s = jax.lax.dot_general(q, k, dimension_numbers=(((1,), (1,)), ((), ())),
                            preferred_element_type=jnp.float32)          # (TQ, TK) f32

    m_prev = m_sc[...]
    m_new = jnp.maximum(m_prev, jnp.max(s, axis=-1, keepdims=True))
    alpha = jnp.exp(m_prev - m_new)
    p = jnp.exp(s - m_new)
    l_sc[...] = alpha * l_sc[...] + jnp.sum(p, axis=-1, keepdims=True)
    acc_sc[...] = alpha * acc_sc[...] + jnp.dot(
        p.astype(jnp.bfloat16), v_ref[0], preferred_element_type=jnp.float32)
    m_sc[...] = m_new

    @pl.when(ki == pl.num_programs(2) - 1)
    def _():
        h_out = acc_sc[...] * pl.reciprocal(l_sc[...], approx=True)       # divide on EUP
        proj = jnp.dot(h_out.astype(jnp.bfloat16), wp_ref[...],
                       preferred_element_type=jnp.float32) + bp_ref[...]
        o_ref[0] = x_ref[0] + proj                                         # residual


# ---------------------------------------------------------------------------
# Wrapper
# ---------------------------------------------------------------------------
def attn_block(x_tok, kparams, *, thw=128, tq=128, tk=128,
               vmem_limit=64 * 1024 * 1024):
    """x_tok: (B, HW, C) float32 channels-last tokens. Returns (B, HW, C) f32."""
    B, HW, C = x_tok.shape
    gamma, beta, gmap, gmapt, wqkv, bqkv, wp, bp = kparams
    G = gmap.shape[1]
    cg = C // G
    thw = min(thw, HW)
    tq = min(tq, HW)
    tk = min(tk, HW)
    assert HW % thw == 0 and HW % tq == 0 and HW % tk == 0

    def cp(sem):
        return pltpu.CompilerParams(dimension_semantics=sem,
                                    vmem_limit_bytes=vmem_limit)

    # ---- stage 1: GroupNorm stats -> per-channel scale/shift ----
    scale, shift = pl.pallas_call(
        functools.partial(gn_stats_kernel, inv_n=1.0 / (HW * cg)),
        out_shape=(jax.ShapeDtypeStruct((B, 1, C), jnp.float32),
                   jax.ShapeDtypeStruct((B, 1, C), jnp.float32)),
        grid=(B, HW // thw),
        in_specs=[
            pl.BlockSpec((1, thw, C), lambda b, t: (b, t, 0)),   # x tile
            pl.BlockSpec((1, C), lambda b, t: (0, 0)),           # gamma
            pl.BlockSpec((1, C), lambda b, t: (0, 0)),           # beta
            pl.BlockSpec((C, G), lambda b, t: (0, 0)),           # group map
            pl.BlockSpec((G, C), lambda b, t: (0, 0)),           # group map^T
        ],
        out_specs=(pl.BlockSpec((1, 1, C), lambda b, t: (b, 0, 0)),
                   pl.BlockSpec((1, 1, C), lambda b, t: (b, 0, 0))),
        scratch_shapes=[pltpu.VMEM((1, C), jnp.float32),
                        pltpu.VMEM((1, C), jnp.float32)],
        compiler_params=cp(("parallel", "arbitrary")),
    )(x_tok, gamma, beta, gmap, gmapt)

    # ---- stage 2: normalize + fused QKV projection (single (B, HW, 3C) slab) ----
    qkv = pl.pallas_call(
        gn_qkv_kernel,
        out_shape=jax.ShapeDtypeStruct((B, HW, 3 * C), jnp.bfloat16),
        grid=(B, HW // thw),
        in_specs=[
            pl.BlockSpec((1, thw, C), lambda b, t: (b, t, 0)),   # x tile
            pl.BlockSpec((1, 1, C), lambda b, t: (b, 0, 0)),     # scale
            pl.BlockSpec((1, 1, C), lambda b, t: (b, 0, 0)),     # shift
            pl.BlockSpec((C, 3 * C), lambda b, t: (0, 0)),       # Wqkv (bf16)
            pl.BlockSpec((1, 3 * C), lambda b, t: (0, 0)),       # bqkv
        ],
        out_specs=pl.BlockSpec((1, thw, 3 * C), lambda b, t: (b, t, 0)),
        compiler_params=cp(("parallel", "parallel")),
    )(x_tok, scale, shift, wqkv, bqkv)

    # ---- stage 3: tiled flash attention + proj_out + residual ----
    # q/k/v are channel-block windows (0 / 1 / 2) of the fused qkv slab.
    out = pl.pallas_call(
        flash_attn_kernel,
        out_shape=jax.ShapeDtypeStruct((B, HW, C), jnp.float32),
        grid=(B, HW // tq, HW // tk),
        in_specs=[
            pl.BlockSpec((1, tq, C), lambda b, qi, ki: (b, qi, 0)),  # q tile
            pl.BlockSpec((1, tk, C), lambda b, qi, ki: (b, ki, 1)),  # k tile
            pl.BlockSpec((1, tk, C), lambda b, qi, ki: (b, ki, 2)),  # v tile
            pl.BlockSpec((1, tq, C), lambda b, qi, ki: (b, qi, 0)),  # x (residual)
            pl.BlockSpec((C, C), lambda b, qi, ki: (0, 0)),          # Wp (bf16)
            pl.BlockSpec((1, C), lambda b, qi, ki: (0, 0)),          # bp
        ],
        out_specs=pl.BlockSpec((1, tq, C), lambda b, qi, ki: (b, qi, 0)),
        scratch_shapes=[pltpu.VMEM((tq, 1), jnp.float32),   # running max
                        pltpu.VMEM((tq, 1), jnp.float32),   # running sum
                        pltpu.VMEM((tq, C), jnp.float32)],  # output accumulator
        compiler_params=cp(("parallel", "parallel", "arbitrary")),
    )(qkv, qkv, qkv, x_tok, wp, bp)

    return out


# ---------------------------------------------------------------------------
# Parameters & pure-JAX reference
# ---------------------------------------------------------------------------
def make_params(key, C):
    keys = jax.random.split(key, 10)
    s = 0.1
    gamma = 1.0 + s * jax.random.normal(keys[0], (1, C), jnp.float32)
    beta = s * jax.random.normal(keys[1], (1, C), jnp.float32)
    wq = s * jax.random.normal(keys[2], (C, C), jnp.float32)   # (Cin, Cout)
    bq = s * jax.random.normal(keys[3], (1, C), jnp.float32)
    wk = s * jax.random.normal(keys[4], (C, C), jnp.float32)
    bk = s * jax.random.normal(keys[5], (1, C), jnp.float32)
    wv = s * jax.random.normal(keys[6], (C, C), jnp.float32)
    bv = s * jax.random.normal(keys[7], (1, C), jnp.float32)
    wp = s * jax.random.normal(keys[8], (C, C), jnp.float32)
    bp = s * jax.random.normal(keys[9], (1, C), jnp.float32)
    return (gamma, beta, wq, bq, wk, bk, wv, bv, wp, bp)


def prepare_kernel_params(raw, C, G=NUM_GROUPS):
    gamma, beta, wq, bq, wk, bk, wv, bv, wp, bp = raw
    cg = C // G
    ch = jnp.arange(C)
    gmap = (ch[:, None] // cg == jnp.arange(G)[None, :]).astype(jnp.float32)  # (C, G)
    gmapt = jnp.asarray(gmap.T)                                               # (G, C)
    sc = C ** -0.5
    # fold the attention scale into Wq/bq; fuse q/k/v into one (C, 3C) bf16 weight
    wqkv = jnp.concatenate([wq * sc, wk, wv], axis=1).astype(jnp.bfloat16)
    bqkv = jnp.concatenate([bq * sc, bk, bv], axis=1)
    return (gamma, beta, gmap, gmapt, wqkv, bqkv, wp.astype(jnp.bfloat16), bp)


def ref_forward(x_tok, raw, G=NUM_GROUPS):
    """Pure-f32 JAX reference matching the PyTorch forward (in (B, HW, C) layout)."""
    gamma, beta, wq, bq, wk, bk, wv, bv, wp, bp = raw
    B, HW, C = x_tok.shape
    cg = C // G
    xg = x_tok.reshape(B, HW, G, cg)
    mean = jnp.mean(xg, axis=(1, 3), keepdims=True)
    var = jnp.mean((xg - mean) ** 2, axis=(1, 3), keepdims=True)
    h = ((xg - mean) / jnp.sqrt(var + EPS)).reshape(B, HW, C)
    h = h * gamma + beta
    q = h @ wq + bq
    k = h @ wk + bk
    v = h @ wv + bv
    w_ = jnp.einsum("bic,bjc->bij", q, k) * (C ** -0.5)
    w_ = jax.nn.softmax(w_, axis=2)
    h_out = jnp.einsum("bij,bjc->bic", w_, v)
    out = h_out @ wp + bp
    return x_tok + out


if __name__ == "__main__":
    # GroupNorm(32) requires C % 32 == 0; C=128 keeps lanes dense (last dim = 128).
    B, C, H, W = 2, 128, 16, 16
    HW = H * W
    key = jax.random.PRNGKey(0)
    kx, kp = jax.random.split(key)

    x_nchw = jax.random.normal(kx, (B, C, H, W), jnp.float32)       # PyTorch-style input
    x_tok = jnp.transpose(x_nchw, (0, 2, 3, 1)).reshape(B, HW, C)   # (B, HW, C) tokens

    raw = make_params(kp, C)
    kparams = prepare_kernel_params(raw, C)

    out_tok = attn_block(x_tok, kparams, thw=128, tq=128, tk=128)
    out_tok = jax.block_until_ready(out_tok)

    ref_tok = ref_forward(x_tok, raw)
    # bf16 MXU matmuls (f32 accumulation) vs an all-f32 reference -> bf16-level tolerance.
    if not jnp.allclose(out_tok, ref_tok, atol=1e-2, rtol=1e-2):
        err = float(jnp.max(jnp.abs(out_tok - ref_tok)))
        raise AssertionError(f"Pallas kernel output mismatch vs reference (max abs err {err})")

    # back to NCHW if the caller wants PyTorch layout
    _ = jnp.transpose(out_tok.reshape(B, H, W, C), (0, 3, 1, 2))

    print("KERNEL_OK")
</pallas_src>

<mosaic_0001>
module attributes {stable_mosaic.version = 11 : i64} {
  func.func @gn_stats_kernel(%arg0: i32, %arg1: i32, %arg2: memref<1x128x128xf32, #tpu.memory_space<vmem>>, %arg3: memref<1x128xf32, #tpu.memory_space<vmem>>, %arg4: memref<1x128xf32, #tpu.memory_space<vmem>>, %arg5: memref<128x32xf32, #tpu.memory_space<vmem>>, %arg6: memref<32x128xf32, #tpu.memory_space<vmem>>, %arg7: memref<1x1x128xf32, #tpu.memory_space<vmem>>, %arg8: memref<1x1x128xf32, #tpu.memory_space<vmem>>, %arg9: memref<1x128xf32, #tpu.memory_space<vmem>>, %arg10: memref<1x128xf32, #tpu.memory_space<vmem>>) attributes {dimension_semantics = [#tpu.dimension_semantics<parallel>, #tpu.dimension_semantics<arbitrary>], iteration_bounds = array<i64: 2, 2>, scalar_prefetch = 0 : i64, scratch_operands = 2 : i64, tpu.core_type = #tpu.core_type<tc>, window_params = [{transform_indices = @transform_0, window_bounds = array<i64: 1, 128, 128>}, {pipeline_mode = #tpu.pipeline_mode<synchronous>, transform_indices = @transform_1, window_bounds = array<i64: 1, 128>}, {pipeline_mode = #tpu.pipeline_mode<synchronous>, transform_indices = @transform_2, window_bounds = array<i64: 1, 128>}, {pipeline_mode = #tpu.pipeline_mode<synchronous>, transform_indices = @transform_3, window_bounds = array<i64: 128, 32>}, {pipeline_mode = #tpu.pipeline_mode<synchronous>, transform_indices = @transform_4, window_bounds = array<i64: 32, 128>}, {transform_indices = @transform_5, window_bounds = array<i64: 1, 1, 128>}, {transform_indices = @transform_6, window_bounds = array<i64: 1, 1, 128>}]} {
    %c0_i32 = arith.constant 0 : i32
    %0 = arith.cmpi eq, %arg1, %c0_i32 : i32
    %1 = arith.extui %0 : i1 to i32
    %c0_i32_0 = arith.constant 0 : i32
    %2 = arith.cmpi ne, %1, %c0_i32_0 : i32
    scf.if %2 {
      %cst_14 = arith.constant 0.000000e+00 : f32
      %18 = vector.broadcast %cst_14 : f32 to vector<1x128xf32>
      %c0_15 = arith.constant 0 : index
      %c0_16 = arith.constant 0 : index
      %19 = vector.load %arg9[%c0_15, %c0_16] : memref<1x128xf32, #tpu.memory_space<vmem>>, vector<1x128xf32>
      tpu.vector_store %arg9[%c0_15, %c0_16], %18 {strides = array<i32>} : memref<1x128xf32, #tpu.memory_space<vmem>>, vector<1x128xf32>,
      %cst_17 = arith.constant 0.000000e+00 : f32
      %20 = vector.broadcast %cst_17 : f32 to vector<1x128xf32>
      %c0_18 = arith.constant 0 : index
      %c0_19 = arith.constant 0 : index
      %21 = vector.load %arg10[%c0_18, %c0_19] : memref<1x128xf32, #tpu.memory_space<vmem>>, vector<1x128xf32>
      tpu.vector_store %arg10[%c0_18, %c0_19], %20 {strides = array<i32>} : memref<1x128xf32, #tpu.memory_space<vmem>>, vector<1x128xf32>,
    } else {
    }
    %c0 = arith.constant 0 : index
    %c0_1 = arith.constant 0 : index
    %c0_2 = arith.constant 0 : index
    %3 = vector.load %arg2[%c0, %c0_1, %c0_2] : memref<1x128x128xf32, #tpu.memory_space<vmem>>, vector<1x128x128xf32>
    %4 = vector.shape_cast %3 : vector<1x128x128xf32> to vector<128x128xf32>
    %cst = arith.constant 1.000000e+00 : f32
    %5 = vector.broadcast %cst : f32 to vector<1x128xf32>
    %c0_3 = arith.constant 0 : index
    %c0_4 = arith.constant 0 : index
    %6 = vector.load %arg9[%c0_3, %c0_4] : memref<1x128xf32, #tpu.memory_space<vmem>>, vector<1x128xf32>
    %cst_5 = arith.constant dense<0.000000e+00> : vector<1x128xf32>
    %7 = tpu.matmul %5, %4, %cst_5 {dimension_numbers = #tpu.dot_dimension_numbers<[1], [0], [0], [1], [0, 0, 1, 1], [], []>} : vector<1x128xf32>, vector<128x128xf32>, vector<1x128xf32> -> vector<1x128xf32>
    %8 = arith.addf %6, %7 : vector<1x128xf32>
    %c0_6 = arith.constant 0 : index
    %c0_7 = arith.constant 0 : index
    %9 = vector.load %arg9[%c0_6, %c0_7] : memref<1x128xf32, #tpu.memory_space<vmem>>, vector<1x128xf32>
    tpu.vector_store %arg9[%c0_6, %c0_7], %8 {strides = array<i32>} : memref<1x128xf32, #tpu.memory_space<vmem>>, vector<1x128xf32>,
    %c0_8 = arith.constant 0 : index
    %c0_9 = arith.constant 0 : index
    %10 = vector.load %arg10[%c0_8, %c0_9] : memref<1x128xf32, #tpu.memory_space<vmem>>, vector<1x128xf32>
    %11 = arith.mulf %4, %4 : vector<128x128xf32>
    %cst_10 = arith.constant dense<0.000000e+00> : vector<1x128xf32>
    %12 = tpu.matmul %5, %11, %cst_10 {dimension_numbers = #tpu.dot_dimension_numbers<[1], [0], [0], [1], [0, 0, 1, 1], [], []>} : vector<1x128xf32>, vector<128x128xf32>, vector<1x128xf32> -> vector<1x128xf32>
    %13 = arith.addf %10, %12 : vector<1x128xf32>
    %c0_11 = arith.constant 0 : index
    %c0_12 = arith.constant 0 : index
    %14 = vector.load %arg10[%c0_11, %c0_12] : memref<1x128xf32, #tpu.memory_space<vmem>>, vector<1x128xf32>
    tpu.vector_store %arg10[%c0_11, %c0_12], %13 {strides = array<i32>} : memref<1x128xf32, #tpu.memory_space<vmem>>, vector<1x128xf32>,
    %c1_i32 = arith.constant 1 : i32
    %15 = arith.cmpi eq, %arg1, %c1_i32 : i32
    %16 = arith.extui %15 : i1 to i32
    %c0_i32_13 = arith.constant 0 : i32
    %17 = arith.cmpi ne, %16, %c0_i32_13 : i32
    scf.if %17 {
      %c0_14 = arith.constant 0 : index
      %c0_15 = arith.constant 0 : index
      %18 = vector.load %arg5[%c0_14, %c0_15] : memref<128x32xf32, #tpu.memory_space<vmem>>, vector<128x32xf32>
      %c0_16 = arith.constant 0 : index
      %c0_17 = arith.constant 0 : index
      %19 = vector.load %arg6[%c0_16, %c0_17] : memref<32x128xf32, #tpu.memory_space<vmem>>, vector<32x128xf32>
      %c0_18 = arith.constant 0 : index
      %c0_19 = arith.constant 0 : index
      %20 = vector.load %arg9[%c0_18, %c0_19] : memref<1x128xf32, #tpu.memory_space<vmem>>, vector<1x128xf32>
      %cst_20 = arith.constant dense<0.000000e+00> : vector<1x32xf32>
      %21 = tpu.matmul %20, %18, %cst_20 {dimension_numbers = #tpu.dot_dimension_numbers<[1], [0], [0], [1], [0, 0, 1, 1], [], []>} : vector<1x128xf32>, vector<128x32xf32>, vector<1x32xf32> -> vector<1x32xf32>
      %c0_21 = arith.constant 0 : index
      %c0_22 = arith.constant 0 : index
      %22 = vector.load %arg10[%c0_21, %c0_22] : memref<1x128xf32, #tpu.memory_space<vmem>>, vector<1x128xf32>
      %cst_23 = arith.constant dense<0.000000e+00> : vector<1x32xf32>
      %23 = tpu.matmul %22, %18, %cst_23 {dimension_numbers = #tpu.dot_dimension_numbers<[1], [0], [0], [1], [0, 0, 1, 1], [], []>} : vector<1x128xf32>, vector<128x32xf32>, vector<1x32xf32> -> vector<1x32xf32>
      %cst_24 = arith.constant 9.765625E-4 : f32
      %24 = vector.broadcast %cst_24 : f32 to vector<1x32xf32>
      %25 = arith.mulf %21, %24 : vector<1x32xf32>
      %cst_25 = arith.constant 9.765625E-4 : f32
      %26 = vector.broadcast %cst_25 : f32 to vector<1x32xf32>
      %27 = arith.mulf %23, %26 : vector<1x32xf32>
      %28 = arith.mulf %25, %25 : vector<1x32xf32>
      %29 = arith.subf %27, %28 : vector<1x32xf32>
      %cst_26 = arith.constant 0.000000e+00 : f32
      %30 = vector.broadcast %cst_26 : f32 to vector<1x32xf32>
      %31 = arith.maximumf %29, %30 : vector<1x32xf32>
      %cst_27 = arith.constant 9.99999997E-7 : f32
      %32 = vector.broadcast %cst_27 : f32 to vector<1x32xf32>
      %33 = arith.addf %31, %32 : vector<1x32xf32>
      %34 = math.rsqrt %33 : vector<1x32xf32>
      %cst_28 = arith.constant dense<0.000000e+00> : vector<1x128xf32>
      %35 = tpu.matmul %25, %19, %cst_28 {dimension_numbers = #tpu.dot_dimension_numbers<[1], [0], [0], [1], [0, 0, 1, 1], [], []>} : vector<1x32xf32>, vector<32x128xf32>, vector<1x128xf32> -> vector<1x128xf32>
      %cst_29 = arith.constant dense<0.000000e+00> : vector<1x128xf32>
      %36 = tpu.matmul %34, %19, %cst_29 {dimension_numbers = #tpu.dot_dimension_numbers<[1], [0], [0], [1], [0, 0, 1, 1], [], []>} : vector<1x32xf32>, vector<32x128xf32>, vector<1x128xf32> -> vector<1x128xf32>
      %c0_30 = arith.constant 0 : index
      %c0_31 = arith.constant 0 : index
      %37 = vector.load %arg3[%c0_30, %c0_31] : memref<1x128xf32, #tpu.memory_space<vmem>>, vector<1x128xf32>
      %38 = arith.mulf %36, %37 : vector<1x128xf32>
      %c0_32 = arith.constant 0 : index
      %c0_33 = arith.constant 0 : index
      %c0_34 = arith.constant 0 : index
      %39 = vector.load %arg7[%c0_32, %c0_33, %c0_34] : memref<1x1x128xf32, #tpu.memory_space<vmem>>, vector<1x1x128xf32>
      %40 = vector.shape_cast %39 : vector<1x1x128xf32> to vector<1x128xf32>
      %41 = vector.shape_cast %38 : vector<1x128xf32> to vector<1x1x128xf32>
      tpu.vector_store %arg7[%c0_32, %c0_33, %c0_34], %41 {strides = array<i32>} : memref<1x1x128xf32, #tpu.memory_space<vmem>>, vector<1x1x128xf32>,
      %c0_35 = arith.constant 0 : index
      %c0_36 = arith.constant 0 : index
      %42 = vector.load %arg4[%c0_35, %c0_36] : memref<1x128xf32, #tpu.memory_space<vmem>>, vector<1x128xf32>
      %43 = arith.mulf %35, %38 : vector<1x128xf32>
      %44 = arith.subf %42, %43 : vector<1x128xf32>
      %c0_37 = arith.constant 0 : index
      %c0_38 = arith.constant 0 : index
      %c0_39 = arith.constant 0 : index
      %45 = vector.load %arg8[%c0_37, %c0_38, %c0_39] : memref<1x1x128xf32, #tpu.memory_space<vmem>>, vector<1x1x128xf32>
      %46 = vector.shape_cast %45 : vector<1x1x128xf32> to vector<1x128xf32>
      %47 = vector.shape_cast %44 : vector<1x128xf32> to vector<1x1x128xf32>
      tpu.vector_store %arg8[%c0_37, %c0_38, %c0_39], %47 {strides = array<i32>} : memref<1x1x128xf32, #tpu.memory_space<vmem>>, vector<1x1x128xf32>,
    } else {
    }
    return
  }
  func.func @transform_0(%arg0: i32, %arg1: i32) -> (i32, i32, i32) {
    %c0_i32 = arith.constant 0 : i32
    %c0_i32_0 = arith.constant 0 : i32
    return %arg0, %arg1, %c0_i32 : i32, i32, i32
  }
  func.func @transform_1(%arg0: i32, %arg1: i32) -> (i32, i32) {
    %c0_i32 = arith.constant 0 : i32
    %c0_i32_0 = arith.constant 0 : i32
    %c0_i32_1 = arith.constant 0 : i32
    return %c0_i32, %c0_i32_0 : i32, i32
  }
  func.func @transform_2(%arg0: i32, %arg1: i32) -> (i32, i32) {
    %c0_i32 = arith.constant 0 : i32
    %c0_i32_0 = arith.constant 0 : i32
    %c0_i32_1 = arith.constant 0 : i32
    return %c0_i32, %c0_i32_0 : i32, i32
  }
  func.func @transform_3(%arg0: i32, %arg1: i32) -> (i32, i32) {
    %c0_i32 = arith.constant 0 : i32
    %c0_i32_0 = arith.constant 0 : i32
    %c0_i32_1 = arith.constant 0 : i32
    return %c0_i32, %c0_i32_0 : i32, i32
  }
  func.func @transform_4(%arg0: i32, %arg1: i32) -> (i32, i32) {
    %c0_i32 = arith.constant 0 : i32
    %c0_i32_0 = arith.constant 0 : i32
    %c0_i32_1 = arith.constant 0 : i32
    return %c0_i32, %c0_i32_0 : i32, i32
  }
  func.func @transform_5(%arg0: i32, %arg1: i32) -> (i32, i32, i32) {
    %c0_i32 = arith.constant 0 : i32
    %c0_i32_0 = arith.constant 0 : i32
    %c0_i32_1 = arith.constant 0 : i32
    return %arg0, %c0_i32, %c0_i32_0 : i32, i32, i32
  }
  func.func @transform_6(%arg0: i32, %arg1: i32) -> (i32, i32, i32) {
    %c0_i32 = arith.constant 0 : i32
    %c0_i32_0 = arith.constant 0 : i32
    %c0_i32_1 = arith.constant 0 : i32
    return %arg0, %c0_i32, %c0_i32_0 : i32, i32, i32
  }
}

</mosaic_0001>

<llo_original>
// kernel: tpu_custom_call.1
$region0: #{tpu_custom_call.1}
  #allocation0 [shape = 'u32[]', space=smem, size = 0x4, offset = 0x4, fixed_abs, tag = 'smem constant byte address 0x4 - core index']
  #allocation1 [shape = 'u32[144,128]{1,0:T(1,128)}', space=vmem, size = 0x12000, scoped, tag = 'internal scratch']
  #allocation2 [shape = 'f32[1,128]{1,0:T(1,128)}', space=vmem, size = 0x200, scoped, tag = 'scratch operand']
  #allocation3 [shape = 'f32[1,128]{1,0:T(1,128)}', space=vmem, size = 0x200, scoped, tag = 'scratch operand']
  %s0 = inlined_call_operand.hbm [shape: f32[2,256,128], index: 0, kind: input, shape index: {}]
  %s1 = inlined_call_operand.hbm [shape: f32[1,128], index: 1, kind: input, shape index: {}]
  %s2 = inlined_call_operand.hbm [shape: f32[1,128], index: 2, kind: input, shape index: {}]
  %s3 = inlined_call_operand.hbm [shape: f32[128,32], index: 3, kind: input, shape index: {}]
  %s4 = inlined_call_operand.hbm [shape: f32[32,128], index: 4, kind: input, shape index: {}]
  %s5 = inlined_call_operand.hbm [shape: f32[2,1,128], index: 5, kind: output, shape index: {0}]
  %s6 = inlined_call_operand.hbm [shape: f32[2,1,128], index: 6, kind: output, shape index: {1}]
  %7 = xla_tuple %s5, %s6
  %s8 = sld [smem:[#allocation0]]
  $region89: #{tpu_custom_call.1} parent=0
    _
  %s10 = ssub.s32 1, %s8
  %s11 = scalar_select 0, %s10, %s8
  $region1: #{tpu_custom_call.1} parent=0
    #allocation4 [shape = 'u8[131072]{0}', space=vmem, size = 0x20000, scoped, tag = 'input window, operand 0']
    #allocation5 [shape = 's32[2]{0}', space=sflag, size = 0x8, scoped, tag = 'scoped memory for tpu_custom_call.1']
    #allocation6 [shape = 's32[2]{0}', space=sflag, size = 0x8, scoped, tag = 'scoped memory for tpu_custom_call.1']
    #allocation7 [shape = 'u8[512]{0}', space=vmem, size = 0x400, scoped, tag = 'input window, operand 1, single buffered']
    #allocation8 [shape = 's32[1]{0}', space=sflag, size = 0x4, scoped, tag = 'scoped memory for tpu_custom_call.1']
    #allocation9 [shape = 'u8[512]{0}', space=vmem, size = 0x400, scoped, tag = 'input window, operand 2, single buffered']
    #allocation10 [shape = 'u8[65536]{0}', space=vmem, size = 0x10000, scoped, tag = 'input window, operand 3, single buffered']
    #allocation11 [shape = 's32[1]{0}', space=sflag, size = 0x4, scoped, tag = 'scoped memory for tpu_custom_call.1']
    #allocation12 [shape = 'u8[16384]{0}', space=vmem, size = 0x4000, scoped, tag = 'input window, operand 4, single buffered']
    #allocation13 [shape = 'u8[1024]{0}', space=vmem, size = 0x400, scoped, tag = 'output window, operand 0']
    #allocation14 [shape = 'u8[1024]{0}', space=vmem, size = 0x400, scoped, tag = 'output window, operand 1']
    #allocation15 [shape = 's32[2]{0}', space=sflag, size = 0x8, scoped, tag = 'scoped memory for tpu_custom_call.1']
    %12 = vsyncpa [#allocation5], 0
    %s13 = scalar_lea.sflag [#allocation5], 1
    %14 = vsyncpa %s13, 0
    %15 = vsyncpa [#allocation8], 0
    %16 = vsyncpa [#allocation11], 0
    %17 = vsyncpa [#allocation6], 0
    %s18 = scalar_lea.sflag [#allocation6], 1
    %19 = vsyncpa %s18, 0
    %20 = vsyncpa [#allocation15], 0
    %s21 = scalar_lea.sflag [#allocation15], 1
    %22 = vsyncpa %s21, 0
    loop: start=0, step=1, limit=6
    $region2: #{tpu_custom_call.1} parent=1 // loop_pre_header
      _
    $region3: #{tpu_custom_call.1} parent=1 // loop_header
      %s24 = sphi 0, %s28
      %p25 = scmp.ge.s32.totalorder %s24, 6
      %s31 = sphi 0, %s43
      %s32 = sphi 0, %s39
      %s33 = sphi 0, %s31
      %s34 = sphi 0, %s32
      %s35 = sphi 0, %s33
      %s36 = sphi 0, %s34
      %s48 = sphi 0, %s50
      %s51 = sphi 0, %s48
      %s52 = sphi 0, %s51
      %s68 = sphi 0, %s52
      %s72 = sphi 0, %s72
      %s74 = sphi 0, %s72
      %s75 = sphi 0, %s74
      %s89 = sphi 0, %s75
      %s93 = sphi 0, %s93
      %s95 = sphi 0, %s93
      %s96 = sphi 0, %s95
      %s110 = sphi 0, %s96
      %s114 = sphi 0, %s114
      %s116 = sphi 0, %s114
      %s117 = sphi 0, %s116
      %s131 = sphi 0, %s117
      %s135 = sphi 0, %s135
      %s137 = sphi 0, %s135
      %s138 = sphi 0, %s137
      %s152 = sphi 0, %s138
      %s158 = sphi 0, %s160
      %s161 = sphi 0, %s158
      %s162 = sphi 0, %s161
      %s178 = sphi 0, %s162
      %s184 = sphi 0, %s186
      %s187 = sphi 0, %s184
      %s188 = sphi 0, %s187
      %s204 = sphi 0, %s188
    $region4: #{tpu_custom_call.1} parent=1 // loop_header_branch
      %27 = sbr.rel (%p25) target = $region8
    $region5: #{tpu_custom_call.1} parent=1 // loop_body
      %s29 = ssub.s32 %s24, 1
      %s30 = ssub.s32 %s24, 2
      %s37 = sadd.s32 1, %s32
      %p38 = scmp.ge.s32.totalorder %s37, 2
      %s39 = scalar_select %p38, 0, %s37
      %s40 = sadd.s32 1, %s31
      %s41 = scalar_select %p38, %s40, %s31
      %p42 = scmp.ge.s32.totalorder %s41, 2
      %s43 = scalar_select %p42, 0, %s41
      %s44 = ssub.s32 %s31, %s43
      %s45 = ssub.s32 %s32, %s39
      %s46 = sor.u32 %s44, %s45
      %p47 = scmp.eq.s32.totalorder %s46, 0
      %s49 = sadd.s32 %s48, 1
      %s50 = scalar_select %p47, %s48, %s49
      %p53 = pneg %p47
      %p54 = scmp.eq.s32.totalorder %s24, 3
      %p55 = por %p53, %p54
      %p56 = scmp.ne.s32.totalorder %s48, %s51
      %p57 = scmp.eq.s32.totalorder %s24, 0
      %p58 = por %p56, %p57
      %p59 = scmp.ne.s32.totalorder %s48, %s51
      %p60 = scmp.eq.s32.totalorder %s29, 3
      %p61 = por %p59, %p60
      %p62 = scmp.ne.s32.totalorder %s51, %s52
      %p63 = scmp.eq.s32.totalorder %s29, 0
      %p64 = por %p62, %p63
      %p65 = scmp.ne.s32.totalorder %s51, %s52
      %p66 = scmp.eq.s32.totalorder %s30, 3
      %p67 = por %p65, %p66
      %p69 = scmp.ne.s32.totalorder %s52, %s68
      %p70 = scmp.eq.s32.totalorder %s30, 0
      %p71 = por %p69, %p70
      %s73 = sadd.s32 %s72, 1
      %p76 = scmp.eq.s32.totalorder %s24, 3
      %p77 = scmp.ne.s32.totalorder %s72, %s74
      %p78 = scmp.eq.s32.totalorder %s24, 0
      %p79 = por %p77, %p78
      %p80 = scmp.ne.s32.totalorder %s72, %s74
      %p81 = scmp.eq.s32.totalorder %s29, 3
      %p82 = por %p80, %p81
      %p83 = scmp.ne.s32.totalorder %s74, %s75
      %p84 = scmp.eq.s32.totalorder %s29, 0
      %p85 = por %p83, %p84
      %p86 = scmp.ne.s32.totalorder %s74, %s75
      %p87 = scmp.eq.s32.totalorder %s30, 3
      %p88 = por %p86, %p87
      %p90 = scmp.ne.s32.totalorder %s75, %s89
      %p91 = scmp.eq.s32.totalorder %s30, 0
      %p92 = por %p90, %p91
      %s94 = sadd.s32 %s93, 1
      %p97 = scmp.eq.s32.totalorder %s24, 3
      %p98 = scmp.ne.s32.totalorder %s93, %s95
      %p99 = scmp.eq.s32.totalorder %s24, 0
      %p100 = por %p98, %p99
      %p101 = scmp.ne.s32.totalorder %s93, %s95
      %p102 = scmp.eq.s32.totalorder %s29, 3
      %p103 = por %p101, %p102
      %p104 = scmp.ne.s32.totalorder %s95, %s96
      %p105 = scmp.eq.s32.totalorder %s29, 0
      %p106 = por %p104, %p105
      %p107 = scmp.ne.s32.totalorder %s95, %s96
      %p108 = scmp.eq.s32.totalorder %s30, 3
      %p109 = por %p107, %p108
      %p111 = scmp.ne.s32.totalorder %s96, %s110
      %p112 = scmp.eq.s32.totalorder %s30, 0
      %p113 = por %p111, %p112
      %s115 = sadd.s32 %s114, 1
      %p118 = scmp.eq.s32.totalorder %s24, 3
      %p119 = scmp.ne.s32.totalorder %s114, %s116
      %p120 = scmp.eq.s32.totalorder %s24, 0
      %p121 = por %p119, %p120
      %p122 = scmp.ne.s32.totalorder %s114, %s116
      %p123 = scmp.eq.s32.totalorder %s29, 3
      %p124 = por %p122, %p123
      %p125 = scmp.ne.s32.totalorder %s116, %s117
      %p126 = scmp.eq.s32.totalorder %s29, 0
      %p127 = por %p125, %p126
      %p128 = scmp.ne.s32.totalorder %s116, %s117
      %p129 = scmp.eq.s32.totalorder %s30, 3
      %p130 = por %p128, %p129
      %p132 = scmp.ne.s32.totalorder %s117, %s131
      %p133 = scmp.eq.s32.totalorder %s30, 0
      %p134 = por %p132, %p133
      %s136 = sadd.s32 %s135, 1
      %p139 = scmp.eq.s32.totalorder %s24, 3
      %p140 = scmp.ne.s32.totalorder %s135, %s137
      %p141 = scmp.eq.s32.totalorder %s24, 0
      %p142 = por %p140, %p141
      %p143 = scmp.ne.s32.totalorder %s135, %s137
      %p144 = scmp.eq.s32.totalorder %s29, 3
      %p145 = por %p143, %p144
      %p146 = scmp.ne.s32.totalorder %s137, %s138
      %p147 = scmp.eq.s32.totalorder %s29, 0
      %p148 = por %p146, %p147
      %p149 = scmp.ne.s32.totalorder %s137, %s138
      %p150 = scmp.eq.s32.totalorder %s30, 3
      %p151 = por %p149, %p150
      %p153 = scmp.ne.s32.totalorder %s138, %s152
      %p154 = scmp.eq.s32.totalorder %s30, 0
      %p155 = por %p153, %p154
      %s156 = ssub.s32 %s31, %s43
      %p157 = scmp.eq.s32.totalorder %s156, 0
      %s159 = sadd.s32 %s158, 1
      %s160 = scalar_select %p157, %s158, %s159
      %p163 = pneg %p157
      %p164 = scmp.eq.s32.totalorder %s24, 3
      %p165 = por %p163, %p164
      %p166 = scmp.ne.s32.totalorder %s158, %s161
      %p167 = scmp.eq.s32.totalorder %s24, 0
      %p168 = por %p166, %p167
      %p169 = scmp.ne.s32.totalorder %s158, %s161
      %p170 = scmp.eq.s32.totalorder %s29, 3
      %p171 = por %p169, %p170
      %p172 = scmp.ne.s32.totalorder %s161, %s162
      %p173 = scmp.eq.s32.totalorder %s29, 0
      %p174 = por %p172, %p173
      %p175 = scmp.ne.s32.totalorder %s161, %s162
      %p176 = scmp.eq.s32.totalorder %s30, 3
      %p177 = por %p175, %p176
      %p179 = scmp.ne.s32.totalorder %s162, %s178
      %p180 = scmp.eq.s32.totalorder %s30, 0
      %p181 = por %p179, %p180
      %s182 = ssub.s32 %s31, %s43
      %p183 = scmp.eq.s32.totalorder %s182, 0
      %s185 = sadd.s32 %s184, 1
      %s186 = scalar_select %p183, %s184, %s185
      %p189 = pneg %p183
      %p190 = scmp.eq.s32.totalorder %s24, 3
      %p191 = por %p189, %p190
      %p192 = scmp.ne.s32.totalorder %s184, %s187
      %p193 = scmp.eq.s32.totalorder %s24, 0
      %p194 = por %p192, %p193
      %p195 = scmp.ne.s32.totalorder %s184, %s187
      %p196 = scmp.eq.s32.totalorder %s29, 3
      %p197 = por %p195, %p196
      %p198 = scmp.ne.s32.totalorder %s187, %s188
      %p199 = scmp.eq.s32.totalorder %s29, 0
      %p200 = por %p198, %p199
      %p201 = scmp.ne.s32.totalorder %s187, %s188
      %p202 = scmp.eq.s32.totalorder %s30, 3
      %p203 = por %p201, %p202
      %p205 = scmp.ne.s32.totalorder %s188, %s204
      %p206 = scmp.eq.s32.totalorder %s30, 0
      %p207 = por %p205, %p206
      %p208 = scmp.le.s32.totalorder 1, %s24
      %p209 = scmp.lt.s32.totalorder %s24, 5
      %p210 = pnand %p208, %p209
      %p211 = pneg %p210
      // Predicated region
      $region9: #{tpu_custom_call.1} parent=5 // pred_check
        _
      $region10: #{tpu_custom_call.1} parent=5 // pred_check_branch
        %213 = sbr.rel (%p210) target = $region12
      $region11: #{tpu_custom_call.1} parent=5 // pred_region
        %s214 = ssub.s32 %s24, 1
        // Predicated region
        $region13: #{tpu_custom_call.1} parent=11 // pred_check
          %p215 = pneg %p85
        $region14: #{tpu_custom_call.1} parent=11 // pred_check_branch
          %217 = sbr.rel (%p215) target = $region16
        $region15: #{tpu_custom_call.1} parent=11 // pred_region
          %s219 = ssub.s32 16, 16
          %220 = vsyncadd [#allocation8], %s219
          %s222 = sshll.u32 [#allocation7], 4
          %s223 = int_to_ptr.vmem [resolvable:$true] %s222
          %225 = dma.hbm_to_vmem [thread:$0]  %s1, 16, %s223, [#allocation8]
        $region16: #{tpu_custom_call.1} parent=11 // pred_fallthru
          _
        // Predicated region
        $region17: #{tpu_custom_call.1} parent=11 // pred_check
          %p226 = pneg %p106
        $region18: #{tpu_custom_call.1} parent=11 // pred_check_branch
          %228 = sbr.rel (%p226) target = $region20
        $region19: #{tpu_custom_call.1} parent=11 // pred_region
          %s230 = ssub.s32 16, 16
          %231 = vsyncadd [#allocation8], %s230
          %s233 = sshll.u32 [#allocation9], 4
          %s234 = int_to_ptr.vmem [resolvable:$true] %s233
          %236 = dma.hbm_to_vmem [thread:$0]  %s2, 16, %s234, [#allocation8]
        $region20: #{tpu_custom_call.1} parent=11 // pred_fallthru
          _
        // Predicated region
        $region21: #{tpu_custom_call.1} parent=11 // pred_check
          %p237 = pneg %p127
        $region22: #{tpu_custom_call.1} parent=11 // pred_check_branch
          %239 = sbr.rel (%p237) target = $region24
        $region23: #{tpu_custom_call.1} parent=11 // pred_region
          %s241 = ssub.s32 2048, 2048
          %242 = vsyncadd [#allocation11], %s241
          %s243 = sshll.u32 [#allocation10], 4
          %s244 = int_to_ptr.vmem [resolvable:$true] %s243
          %249 = dma.hbm_to_vmem [thread:$0]  %s3, 2048, %s244, [#allocation11], 128, 128, 8
        $region24: #{tpu_custom_call.1} parent=11 // pred_fallthru
          _
        // Predicated region
        $region25: #{tpu_custom_call.1} parent=11 // pred_check
          %p250 = pneg %p148
        $region26: #{tpu_custom_call.1} parent=11 // pred_check_branch
          %252 = sbr.rel (%p250) target = $region28
        $region27: #{tpu_custom_call.1} parent=11 // pred_region
          %s254 = ssub.s32 512, 512
          %255 = vsyncadd [#allocation11], %s254
          %s256 = sshll.u32 [#allocation12], 4
          %s257 = int_to_ptr.vmem [resolvable:$true] %s256
          %262 = dma.hbm_to_vmem [thread:$0]  %s4, 512, %s257, [#allocation11], 128, 128, 8
        $region28: #{tpu_custom_call.1} parent=11 // pred_fallthru
          _
      $region12: #{tpu_custom_call.1} parent=5 // pred_fallthru
        _
      %p263 = scmp.lt.s32.totalorder %s24, 4
      // Predicated region
      $region29: #{tpu_custom_call.1} parent=5 // pred_check
        %p264 = pneg %p263
      $region30: #{tpu_custom_call.1} parent=5 // pred_check_branch
        %266 = sbr.rel (%p264) target = $region32
      $region31: #{tpu_custom_call.1} parent=5 // pred_region
        // Predicated region
        $region33: #{tpu_custom_call.1} parent=31 // pred_check
          %p267 = pneg %p58
        $region34: #{tpu_custom_call.1} parent=31 // pred_check_branch
          %269 = sbr.rel (%p267) target = $region36
        $region35: #{tpu_custom_call.1} parent=31 // pred_region
          %s270 = sand.u32 %s48, 1
          %s271 = scalar_lea.sflag [#allocation5], %s270
          %s272 = sand.u32 %s48, 1
          %s273 = smul.addr %s272, 128
          %s274 = scalar_lea.vmem [#allocation4], %s273
          %s275 = smul.u32 16, %s32
          %s277 = ssub.s32 2048, 2048
          %278 = vsyncadd %s271, %s277
          %s279 = smul.addr %s31, 32
          %s280 = sadd.s32 %s275, %s279
          %s281 = smul.addr %s280, 128
          %s282 = scalar_lea.hbm %s0, %s281
          %s283 = sshll.u32 %s274, 4
          %s284 = int_to_ptr.vmem [resolvable:$true] %s283
          %289 = dma.hbm_to_vmem [thread:$0]  %s282, 2048, %s284, %s271, 128, 128, 8
        $region36: #{tpu_custom_call.1} parent=31 // pred_fallthru
          _
      $region32: #{tpu_custom_call.1} parent=5 // pred_fallthru
        _
      %p290 = scmp.le.s32.totalorder 1, %s24
      %p291 = scmp.lt.s32.totalorder %s24, 5
      %p292 = pnand %p290, %p291
      %p293 = pneg %p292
      // Predicated region
      $region37: #{tpu_custom_call.1} parent=5 // pred_check
        _
      $region38: #{tpu_custom_call.1} parent=5 // pred_check_branch
        %295 = sbr.rel (%p292) target = $region40
      $region39: #{tpu_custom_call.1} parent=5 // pred_region
        %s296 = ssub.s32 %s24, 1
        %s297 = sand.u32 %s51, 1
        %s298 = scalar_lea.sflag [#allocation5], %s297
        %s299 = sand.u32 %s51, 1
        %s300 = smul.addr %s299, 128
        %s301 = scalar_lea.vmem [#allocation4], %s300
        // Predicated region
        $region41: #{tpu_custom_call.1} parent=39 // pred_check
          %p302 = pneg %p64
        $region42: #{tpu_custom_call.1} parent=39 // pred_check_branch
          %304 = sbr.rel (%p302) target = $region44
        $region43: #{tpu_custom_call.1} parent=39 // pred_region
          %305 = dma.done %s298, 2048
        $region44: #{tpu_custom_call.1} parent=39 // pred_fallthru
          _
        // Predicated region
        $region45: #{tpu_custom_call.1} parent=39 // pred_check
          %p306 = pneg %p85
        $region46: #{tpu_custom_call.1} parent=39 // pred_check_branch
          %308 = sbr.rel (%p306) target = $region48
        $region47: #{tpu_custom_call.1} parent=39 // pred_region
          %309 = dma.done [#allocation8], 16
        $region48: #{tpu_custom_call.1} parent=39 // pred_fallthru
          _
        // Predicated region
        $region49: #{tpu_custom_call.1} parent=39 // pred_check
          %p310 = pneg %p106
        $region50: #{tpu_custom_call.1} parent=39 // pred_check_branch
          %312 = sbr.rel (%p310) target = $region52
        $region51: #{tpu_custom_call.1} parent=39 // pred_region
          %313 = dma.done [#allocation8], 16
        $region52: #{tpu_custom_call.1} parent=39 // pred_fallthru
          _
        // Predicated region
        $region53: #{tpu_custom_call.1} parent=39 // pred_check
          %p314 = pneg %p127
        $region54: #{tpu_custom_call.1} parent=39 // pred_check_branch
          %316 = sbr.rel (%p314) target = $region56
        $region55: #{tpu_custom_call.1} parent=39 // pred_region
          %317 = dma.done [#allocation11], 2048
        $region56: #{tpu_custom_call.1} parent=39 // pred_fallthru
          _
        // Predicated region
        $region57: #{tpu_custom_call.1} parent=39 // pred_check
          %p318 = pneg %p148
        $region58: #{tpu_custom_call.1} parent=39 // pred_check_branch
          %320 = sbr.rel (%p318) target = $region60
        $region59: #{tpu_custom_call.1} parent=39 // pred_region
          %321 = dma.done [#allocation11], 512
        $region60: #{tpu_custom_call.1} parent=39 // pred_fallthru
          _
        %s322 = sand.u32 %s51, 1
        %s323 = scalar_lea.sflag [#allocation5], %s322
        %s324 = sand.u32 %s51, 1
        %s325 = smul.addr %s324, 128
        %s326 = scalar_lea.vmem [#allocation4], %s325
        %p327 = pneg %p64
        %p328 = pneg %p61
        %p329 = pneg %p85
        %p330 = pneg %p82
        %p331 = pneg %p106
        %p332 = pneg %p103
        %p333 = pneg %p127
        %p334 = pneg %p124
        %p335 = pneg %p148
        %p336 = pneg %p145
        %p337 = pneg %p174
        %p338 = pneg %p171
        %s339 = sand.u32 %s161, 1
        %s340 = scalar_lea.sflag [#allocation6], %s339
        %s341 = sand.u32 %s161, 1
        %s342 = scalar_lea.vmem [#allocation13], %s341
        %p343 = pneg %p200
        %p344 = pneg %p197
        %s345 = sand.u32 %s187, 1
        %s346 = scalar_lea.sflag [#allocation15], %s345
        %s347 = sand.u32 %s187, 1
        %s348 = scalar_lea.vmem [#allocation14], %s347
        %s349 = smul.u32 16, %s34
        %p350 = scmp.eq.s32.totalorder %s34, 0
        // Predicated region
        $region61: #{tpu_custom_call.1} parent=39 // pred_check
          %p351 = pneg %p350
        $region62: #{tpu_custom_call.1} parent=39 // pred_check_branch
          %353 = sbr.rel (%p351) target = $region64
        $region63: #{tpu_custom_call.1} parent=39 // pred_region
          %354 = vst [vmem:[#allocation2] sm:$0x1] 0.0
          %355 = vst [vmem:[#allocation3] sm:$0x1] 0.0
        $region64: #{tpu_custom_call.1} parent=39 // pred_fallthru
          _
        %v356 = vld [vmem:[%s301] sm:$0xff]
        %v357 = vld [vmem:[%s301 + $0x8] sm:$0xff]
        %v358 = vld [vmem:[%s301 + $0x10] sm:$0xff]
        %v359 = vld [vmem:[%s301 + $0x18] sm:$0xff]
        %v360 = vld [vmem:[%s301 + $0x20] sm:$0xff]
        %v361 = vld [vmem:[%s301 + $0x28] sm:$0xff]
        %v362 = vld [vmem:[%s301 + $0x30] sm:$0xff]
        %v363 = vld [vmem:[%s301 + $0x38] sm:$0xff]
        %v364 = vld [vmem:[%s301 + $0x40] sm:$0xff]
        %v365 = vld [vmem:[%s301 + $0x48] sm:$0xff]
        %v366 = vld [vmem:[%s301 + $0x50] sm:$0xff]
        %v367 = vld [vmem:[%s301 + $0x58] sm:$0xff]
        %v368 = vld [vmem:[%s301 + $0x60] sm:$0xff]
        %v369 = vld [vmem:[%s301 + $0x68] sm:$0xff]
        %v370 = vld [vmem:[%s301 + $0x70] sm:$0xff]
        %v371 = vld [vmem:[%s301 + $0x78] sm:$0xff]
        %v372 = vld [vmem:[#allocation2] sm:$0x1]
        %373 = vmatprep.subr.mxu0 0.0
        %374 = vmatpush1.msra.mxu0 %v356
        %375 = vmatprep.subr.mxu0 0.0
        %376 = vmatpush1.msra.mxu0 %v357
        %377 = vmatprep.subr.mxu0 0.0
        %378 = vmatpush1.msra.mxu0 %v358
        %379 = vmatprep.subr.mxu0 0.0
        %380 = vmatpush1.msra.mxu0 %v359
        %381 = vmatprep.subr.mxu0 0.0
        %382 = vmatpush1.msra.mxu0 %v360
        %383 = vmatprep.subr.mxu0 0.0
        %384 = vmatpush1.msra.mxu0 %v361
        %385 = vmatprep.subr.mxu0 0.0
        %386 = vmatpush1.msra.mxu0 %v362
        %387 = vmatprep.subr.mxu0 0.0
        %388 = vmatpush1.msra.mxu0 %v363
        %389 = vmatprep.subr.mxu0 0.0
        %390 = vmatpush1.msra.mxu0 %v364
        %391 = vmatprep.subr.mxu0 0.0
        %392 = vmatpush1.msra.mxu0 %v365
        %393 = vmatprep.subr.mxu0 0.0
        %394 = vmatpush1.msra.mxu0 %v366
        %395 = vmatprep.subr.mxu0 0.0
        %396 = vmatpush1.msra.mxu0 %v367
        %397 = vmatprep.subr.mxu0 0.0
        %398 = vmatpush1.msra.mxu0 %v368
        %399 = vmatprep.subr.mxu0 0.0
        %400 = vmatpush1.msra.mxu0 %v369
        %401 = vmatprep.subr.mxu0 0.0
        %402 = vmatpush1.msra.mxu0 %v370
        %403 = vmatprep.subr.mxu0 0.0
        %404 = vmatpush1.msra.mxu0 %v371
        %405 = vmatprep.subr.mxu0 0.0
        %406 = vmatpush1.msra.mxu0 0.0
        %407 = vmatprep.subr.mxu0 0.0
        %408 = vmatpush1.msra.mxu0 0.0
        %409 = vmatprep.subr.mxu0 0.0
        %410 = vmatpush1.msra.mxu0 0.0
        %411 = vmatprep.subr.mxu0 0.0
        %412 = vmatpush1.msra.mxu0 0.0
        %413 = vmatprep.subr.mxu0 0.0
        %414 = vmatpush1.msra.mxu0 0.0
        %415 = vmatprep.subr.mxu0 0.0
        %416 = vmatpush1.msra.mxu0 0.0
        %417 = vmatprep.subr.mxu0 0.0
        %418 = vmatpush1.msra.mxu0 0.0
        %419 = vmatprep.subr.mxu0 0.0
        %420 = vmatpush1.msra.mxu0 0.0
        %421 = vmatprep.subr.mxu0 0.0
        %422 = vmatpush1.msra.mxu0 0.0
        %423 = vmatprep.subr.mxu0 0.0
        %424 = vmatpush1.msra.mxu0 0.0
        %425 = vmatprep.subr.mxu0 0.0
        %426 = vmatpush1.msra.mxu0 0.0
        %427 = vmatprep.subr.mxu0 0.0
        %428 = vmatpush1.msra.mxu0 0.0
        %429 = vmatprep.subr.mxu0 0.0
        %430 = vmatpush1.msra.mxu0 0.0
        %431 = vmatprep.subr.mxu0 0.0
        %432 = vmatpush1.msra.mxu0 0.0
        %433 = vmatprep.subr.mxu0 0.0
        %434 = vmatpush1.msra.mxu0 0.0
        %435 = vmatprep.subr.mxu0 0.0
        %436 = vmatpush1.msra.mxu0 0.0
        %437 = vmatprep.mubr.f32.mxu0 0.0
        %438 = vmatmul.mubr.f32.gmra.mrb[0].mxu0 1.0
        %v439 = vpop.f32.mrb[0].mxu0
        %v440 = vadd.f32 0.0, %v439
        %v441 = vpop.f32.mrb[0].mxu0
        %442 = vdwg.mxu0
        %v443 = vadd.f32 %v372, %v440
        %444 = vst [vmem:[#allocation2] sm:$0x1] %v443
        %v445 = vld [vmem:[#allocation3] sm:$0x1]
        %v446 = vmul.f32 %v356, %v356
        %v447 = vmul.f32 %v357, %v357
        %v448 = vmul.f32 %v358, %v358
        %v449 = vmul.f32 %v359, %v359
        %v450 = vmul.f32 %v360, %v360
        %v451 = vmul.f32 %v361, %v361
        %v452 = vmul.f32 %v362, %v362
        %v453 = vmul.f32 %v363, %v363
        %v454 = vmul.f32 %v364, %v364
        %v455 = vmul.f32 %v365, %v365
        %v456 = vmul.f32 %v366, %v366
        %v457 = vmul.f32 %v367, %v367
        %v458 = vmul.f32 %v368, %v368
        %v459 = vmul.f32 %v369, %v369
        %v460 = vmul.f32 %v370, %v370
        %v461 = vmul.f32 %v371, %v371
        %462 = vmatprep.subr.mxu0 0.0
        %463 = vmatpush1.msra.mxu0 %v446
        %464 = vmatprep.subr.mxu0 0.0
        %465 = vmatpush1.msra.mxu0 %v447
        %466 = vmatprep.subr.mxu0 0.0
        %467 = vmatpush1.msra.mxu0 %v448
        %468 = vmatprep.subr.mxu0 0.0
        %469 = vmatpush1.msra.mxu0 %v449
        %470 = vmatprep.subr.mxu0 0.0
        %471 = vmatpush1.msra.mxu0 %v450
        %472 = vmatprep.subr.mxu0 0.0
        %473 = vmatpush1.msra.mxu0 %v451
        %474 = vmatprep.subr.mxu0 0.0
        %475 = vmatpush1.msra.mxu0 %v452
        %476 = vmatprep.subr.mxu0 0.0
        %477 = vmatpush1.msra.mxu0 %v453
        %478 = vmatprep.subr.mxu0 0.0
        %479 = vmatpush1.msra.mxu0 %v454
        %480 = vmatprep.subr.mxu0 0.0
        %481 = vmatpush1.msra.mxu0 %v455
        %482 = vmatprep.subr.mxu0 0.0
        %483 = vmatpush1.msra.mxu0 %v456
        %484 = vmatprep.subr.mxu0 0.0
        %485 = vmatpush1.msra.mxu0 %v457
        %486 = vmatprep.subr.mxu0 0.0
        %487 = vmatpush1.msra.mxu0 %v458
        %488 = vmatprep.subr.mxu0 0.0
        %489 = vmatpush1.msra.mxu0 %v459
        %490 = vmatprep.subr.mxu0 0.0
        %491 = vmatpush1.msra.mxu0 %v460
        %492 = vmatprep.subr.mxu0 0.0
        %493 = vmatpush1.msra.mxu0 %v461
        %494 = vmatprep.subr.mxu0 0.0
        %495 = vmatpush1.msra.mxu0 0.0
        %496 = vmatprep.subr.mxu0 0.0
        %497 = vmatpush1.msra.mxu0 0.0
        %498 = vmatprep.subr.mxu0 0.0
        %499 = vmatpush1.msra.mxu0 0.0
        %500 = vmatprep.subr.mxu0 0.0
        %501 = vmatpush1.msra.mxu0 0.0
        %502 = vmatprep.subr.mxu0 0.0
        %503 = vmatpush1.msra.mxu0 0.0
        %504 = vmatprep.subr.mxu0 0.0
        %505 = vmatpush1.msra.mxu0 0.0
        %506 = vmatprep.subr.mxu0 0.0
        %507 = vmatpush1.msra.mxu0 0.0
        %508 = vmatprep.subr.mxu0 0.0
        %509 = vmatpush1.msra.mxu0 0.0
        %510 = vmatprep.subr.mxu0 0.0
        %511 = vmatpush1.msra.mxu0 0.0
        %512 = vmatprep.subr.mxu0 0.0
        %513 = vmatpush1.msra.mxu0 0.0
        %514 = vmatprep.subr.mxu0 0.0
        %515 = vmatpush1.msra.mxu0 0.0
        %516 = vmatprep.subr.mxu0 0.0
        %517 = vmatpush1.msra.mxu0 0.0
        %518 = vmatprep.subr.mxu0 0.0
        %519 = vmatpush1.msra.mxu0 0.0
        %520 = vmatprep.subr.mxu0 0.0
        %521 = vmatpush1.msra.mxu0 0.0
        %522 = vmatprep.subr.mxu0 0.0
        %523 = vmatpush1.msra.mxu0 0.0
        %524 = vmatprep.subr.mxu0 0.0
        %525 = vmatpush1.msra.mxu0 0.0
        %526 = vmatprep.mubr.f32.mxu0 0.0
        %527 = vmatmul.mubr.f32.gmra.mrb[0].mxu0 1.0
        %v528 = vpop.f32.mrb[0].mxu0
        %v529 = vadd.f32 0.0, %v528
        %v530 = vpop.f32.mrb[0].mxu0
        %531 = vdwg.mxu0
        %v532 = vadd.f32 %v445, %v529
        %533 = vst [vmem:[#allocation3] sm:$0x1] %v532
        %p534 = scmp.eq.s32.totalorder %s34, 1
        // Predicated region
        $region65: #{tpu_custom_call.1} parent=39 // pred_check
          %p535 = pneg %p534
        $region66: #{tpu_custom_call.1} parent=39 // pred_check_branch
          %537 = sbr.rel (%p535) target = $region68
        $region67: #{tpu_custom_call.1} parent=39 // pred_region
          %v538 = vld [vmem:[#allocation10] sm:$0xff]
          %v539 = vld [vmem:[#allocation10 + $0x8] sm:$0xff]
          %v540 = vld [vmem:[#allocation10 + $0x10] sm:$0xff]
          %v541 = vld [vmem:[#allocation10 + $0x18] sm:$0xff]
          %v542 = vld [vmem:[#allocation10 + $0x20] sm:$0xff]
          %v543 = vld [vmem:[#allocation10 + $0x28] sm:$0xff]
          %v544 = vld [vmem:[#allocation10 + $0x30] sm:$0xff]
          %v545 = vld [vmem:[#allocation10 + $0x38] sm:$0xff]
          %v546 = vld [vmem:[#allocation10 + $0x40] sm:$0xff]
          %v547 = vld [vmem:[#allocation10 + $0x48] sm:$0xff]
          %v548 = vld [vmem:[#allocation10 + $0x50] sm:$0xff]
          %v549 = vld [vmem:[#allocation10 + $0x58] sm:$0xff]
          %v550 = vld [vmem:[#allocation10 + $0x60] sm:$0xff]
          %v551 = vld [vmem:[#allocation10 + $0x68] sm:$0xff]
          %v552 = vld [vmem:[#allocation10 + $0x70] sm:$0xff]
          %v553 = vld [vmem:[#allocation10 + $0x78] sm:$0xff]
          %v554 = vld [vmem:[#allocation12] sm:$0xff]
          %v555 = vld [vmem:[#allocation12 + $0x8] sm:$0xff]
          %v556 = vld [vmem:[#allocation12 + $0x10] sm:$0xff]
          %v557 = vld [vmem:[#allocation12 + $0x18] sm:$0xff]
          %v558 = vld [vmem:[#allocation2] sm:$0x1]
          %559 = vmatprep.subr.mxu0 0.0
          %560 = vmatpush1.msra.mxu0 %v538
          %561 = vmatprep.subr.mxu0 0.0
          %562 = vmatpush1.msra.mxu0 %v539
          %563 = vmatprep.subr.mxu0 0.0
          %564 = vmatpush1.msra.mxu0 %v540
          %565 = vmatprep.subr.mxu0 0.0
          %566 = vmatpush1.msra.mxu0 %v541
          %567 = vmatprep.subr.mxu0 0.0
          %568 = vmatpush1.msra.mxu0 %v542
          %569 = vmatprep.subr.mxu0 0.0
          %570 = vmatpush1.msra.mxu0 %v543
          %571 = vmatprep.subr.mxu0 0.0
          %572 = vmatpush1.msra.mxu0 %v544
          %573 = vmatprep.subr.mxu0 0.0
          %574 = vmatpush1.msra.mxu0 %v545
          %575 = vmatprep.subr.mxu0 0.0
          %576 = vmatpush1.msra.mxu0 %v546
          %577 = vmatprep.subr.mxu0 0.0
          %578 = vmatpush1.msra.mxu0 %v547
          %579 = vmatprep.subr.mxu0 0.0
          %580 = vmatpush1.msra.mxu0 %v548
          %581 = vmatprep.subr.mxu0 0.0
          %582 = vmatpush1.msra.mxu0 %v549
          %583 = vmatprep.subr.mxu0 0.0
          %584 = vmatpush1.msra.mxu0 %v550
          %585 = vmatprep.subr.mxu0 0.0
          %586 = vmatpush1.msra.mxu0 %v551
          %587 = vmatprep.subr.mxu0 0.0
          %588 = vmatpush1.msra.mxu0 %v552
          %589 = vmatprep.subr.mxu0 0.0
          %590 = vmatpush1.msra.mxu0 %v553
          %591 = vmatprep.subr.mxu0 0.0
          %592 = vmatpush1.msra.mxu0 0.0
          %593 = vmatprep.subr.mxu0 0.0
          %594 = vmatpush1.msra.mxu0 0.0
          %595 = vmatprep.subr.mxu0 0.0
          %596 = vmatpush1.msra.mxu0 0.0
          %597 = vmatprep.subr.mxu0 0.0
          %598 = vmatpush1.msra.mxu0 0.0
          %599 = vmatprep.subr.mxu0 0.0
          %600 = vmatpush1.msra.mxu0 0.0
          %601 = vmatprep.subr.mxu0 0.0
          %602 = vmatpush1.msra.mxu0 0.0
          %603 = vmatprep.subr.mxu0 0.0
          %604 = vmatpush1.msra.mxu0 0.0
          %605 = vmatprep.subr.mxu0 0.0
          %606 = vmatpush1.msra.mxu0 0.0
          %607 = vmatprep.subr.mxu0 0.0
          %608 = vmatpush1.msra.mxu0 0.0
          %609 = vmatprep.subr.mxu0 0.0
          %610 = vmatpush1.msra.mxu0 0.0
          %611 = vmatprep.subr.mxu0 0.0
          %612 = vmatpush1.msra.mxu0 0.0
          %613 = vmatprep.subr.mxu0 0.0
          %614 = vmatpush1.msra.mxu0 0.0
          %615 = vmatprep.subr.mxu0 0.0
          %616 = vmatpush1.msra.mxu0 0.0
          %617 = vmatprep.subr.mxu0 0.0
          %618 = vmatpush1.msra.mxu0 0.0
          %619 = vmatprep.subr.mxu0 0.0
          %620 = vmatpush1.msra.mxu0 0.0
          %621 = vmatprep.subr.mxu0 0.0
          %622 = vmatpush1.msra.mxu0 0.0
          %623 = vmatprep.mubr.f32.mxu0 0.0
          %624 = vmatmul.mubr.f32.gmra.mrb[0].mxu0 %v558
          %v625 = vpop.f32.mrb[0].mxu0
          %v626 = vadd.f32 0.0, %v625
          %v627 = vpop.f32.mrb[0].mxu0
          %628 = vdwg.mxu0
          %v629 = vld [vmem:[#allocation3] sm:$0x1]
          %630 = vmatprep.subr.mxu0 0.0
          %631 = vmatpush1.msra.mxu0 %v538
          %632 = vmatprep.subr.mxu0 0.0
          %633 = vmatpush1.msra.mxu0 %v539
          %634 = vmatprep.subr.mxu0 0.0
          %635 = vmatpush1.msra.mxu0 %v540
          %636 = vmatprep.subr.mxu0 0.0
          %637 = vmatpush1.msra.mxu0 %v541
          %638 = vmatprep.subr.mxu0 0.0
          %639 = vmatpush1.msra.mxu0 %v542
          %640 = vmatprep.subr.mxu0 0.0
          %641 = vmatpush1.msra.mxu0 %v543
          %642 = vmatprep.subr.mxu0 0.0
          %643 = vmatpush1.msra.mxu0 %v544
          %644 = vmatprep.subr.mxu0 0.0
          %645 = vmatpush1.msra.mxu0 %v545
          %646 = vmatprep.subr.mxu0 0.0
          %647 = vmatpush1.msra.mxu0 %v546
          %648 = vmatprep.subr.mxu0 0.0
          %649 = vmatpush1.msra.mxu0 %v547
          %650 = vmatprep.subr.mxu0 0.0
          %651 = vmatpush1.msra.mxu0 %v548
          %652 = vmatprep.subr.mxu0 0.0
          %653 = vmatpush1.msra.mxu0 %v549
          %654 = vmatprep.subr.mxu0 0.0
          %655 = vmatpush1.msra.mxu0 %v550
          %656 = vmatprep.subr.mxu0 0.0
          %657 = vmatpush1.msra.mxu0 %v551
          %658 = vmatprep.subr.mxu0 0.0
          %659 = vmatpush1.msra.mxu0 %v552
          %660 = vmatprep.subr.mxu0 0.0
          %661 = vmatpush1.msra.mxu0 %v553
          %662 = vmatprep.subr.mxu0 0.0
          %663 = vmatpush1.msra.mxu0 0.0
          %664 = vmatprep.subr.mxu0 0.0
          %665 = vmatpush1.msra.mxu0 0.0
          %666 = vmatprep.subr.mxu0 0.0
          %667 = vmatpush1.msra.mxu0 0.0
          %668 = vmatprep.subr.mxu0 0.0
          %669 = vmatpush1.msra.mxu0 0.0
          %670 = vmatprep.subr.mxu0 0.0
          %671 = vmatpush1.msra.mxu0 0.0
          %672 = vmatprep.subr.mxu0 0.0
          %673 = vmatpush1.msra.mxu0 0.0
          %674 = vmatprep.subr.mxu0 0.0
          %675 = vmatpush1.msra.mxu0 0.0
          %676 = vmatprep.subr.mxu0 0.0
          %677 = vmatpush1.msra.mxu0 0.0
          %678 = vmatprep.subr.mxu0 0.0
          %679 = vmatpush1.msra.mxu0 0.0
          %680 = vmatprep.subr.mxu0 0.0
          %681 = vmatpush1.msra.mxu0 0.0
          %682 = vmatprep.subr.mxu0 0.0
          %683 = vmatpush1.msra.mxu0 0.0
          %684 = vmatprep.subr.mxu0 0.0
          %685 = vmatpush1.msra.mxu0 0.0
          %686 = vmatprep.subr.mxu0 0.0
          %687 = vmatpush1.msra.mxu0 0.0
          %688 = vmatprep.subr.mxu0 0.0
          %689 = vmatpush1.msra.mxu0 0.0
          %690 = vmatprep.subr.mxu0 0.0
          %691 = vmatpush1.msra.mxu0 0.0
          %692 = vmatprep.subr.mxu0 0.0
          %693 = vmatpush1.msra.mxu0 0.0
          %694 = vmatprep.mubr.f32.mxu0 0.0
          %695 = vmatmul.mubr.f32.gmra.mrb[0].mxu0 %v629
          %v696 = vpop.f32.mrb[0].mxu0
          %v697 = vadd.f32 0.0, %v696
          %v698 = vpop.f32.mrb[0].mxu0
          %699 = vdwg.mxu0
          %v700 = vmul.f32 %v626, 0.0009765625
          %v701 = vmul.f32 %v697, 0.0009765625
          %v702 = vmul.f32 %v700, %v700
          %v703 = vsub.f32 %v701, %v702
          %v704 = vmax.f32 %v703, 0.0
          %v705 = vadd.f32 %v704, 1e-06
          %v706 = vrsqrt.pop %v705
          %vm707 = vcmask 261120
          %v709 = vsel %vm707, %v700, 0
          %711 = vmatprep.subr.mxu0 0.0
          %712 = vmatpush1.msra.mxu0 %v554
          %713 = vmatprep.subr.mxu0 0.0
          %714 = vmatpush1.msra.mxu0 %v555
          %715 = vmatprep.subr.mxu0 0.0
          %716 = vmatpush1.msra.mxu0 %v556
          %717 = vmatprep.subr.mxu0 0.0
          %718 = vmatpush1.msra.mxu0 %v557
          %719 = vmatprep.subr.mxu0 0.0
          %720 = vmatpush1.msra.mxu0 0.0
          %721 = vmatprep.subr.mxu0 0.0
          %722 = vmatpush1.msra.mxu0 0.0
          %723 = vmatprep.subr.mxu0 0.0
          %724 = vmatpush1.msra.mxu0 0.0
          %725 = vmatprep.subr.mxu0 0.0
          %726 = vmatpush1.msra.mxu0 0.0
          %727 = vmatprep.subr.mxu0 0.0
          %728 = vmatpush1.msra.mxu0 0.0
          %729 = vmatprep.subr.mxu0 0.0
          %730 = vmatpush1.msra.mxu0 0.0
          %731 = vmatprep.subr.mxu0 0.0
          %732 = vmatpush1.msra.mxu0 0.0
          %733 = vmatprep.subr.mxu0 0.0
          %734 = vmatpush1.msra.mxu0 0.0
          %735 = vmatprep.subr.mxu0 0.0
          %736 = vmatpush1.msra.mxu0 0.0
          %737 = vmatprep.subr.mxu0 0.0
          %738 = vmatpush1.msra.mxu0 0.0
          %739 = vmatprep.subr.mxu0 0.0
          %740 = vmatpush1.msra.mxu0 0.0
          %741 = vmatprep.subr.mxu0 0.0
          %742 = vmatpush1.msra.mxu0 0.0
          %743 = vmatprep.subr.mxu0 0.0
          %744 = vmatpush1.msra.mxu0 0.0
          %745 = vmatprep.subr.mxu0 0.0
          %746 = vmatpush1.msra.mxu0 0.0
          %747 = vmatprep.subr.mxu0 0.0
          %748 = vmatpush1.msra.mxu0 0.0
          %749 = vmatprep.subr.mxu0 0.0
          %750 = vmatpush1.msra.mxu0 0.0
          %751 = vmatprep.subr.mxu0 0.0
          %752 = vmatpush1.msra.mxu0 0.0
          %753 = vmatprep.subr.mxu0 0.0
          %754 = vmatpush1.msra.mxu0 0.0
          %755 = vmatprep.subr.mxu0 0.0
          %756 = vmatpush1.msra.mxu0 0.0
          %757 = vmatprep.subr.mxu0 0.0
          %758 = vmatpush1.msra.mxu0 0.0
          %759 = vmatprep.subr.mxu0 0.0
          %760 = vmatpush1.msra.mxu0 0.0
          %761 = vmatprep.subr.mxu0 0.0
          %762 = vmatpush1.msra.mxu0 0.0
          %763 = vmatprep.subr.mxu0 0.0
          %764 = vmatpush1.msra.mxu0 0.0
          %765 = vmatprep.subr.mxu0 0.0
          %766 = vmatpush1.msra.mxu0 0.0
          %767 = vmatprep.subr.mxu0 0.0
          %768 = vmatpush1.msra.mxu0 0.0
          %769 = vmatprep.subr.mxu0 0.0
          %770 = vmatpush1.msra.mxu0 0.0
          %771 = vmatprep.subr.mxu0 0.0
          %772 = vmatpush1.msra.mxu0 0.0
          %773 = vmatprep.subr.mxu0 0.0
          %774 = vmatpush1.msra.mxu0 0.0
          %775 = vmatprep.mubr.f32.mxu0 0.0
          %776 = vmatmul.mubr.f32.gmra.mrb[0].mxu0 %v709
          %v777 = vpop.f32.mrb[0].mxu0
          %v778 = vadd.f32 0.0, %v777
          %v779 = vpop.f32.mrb[0].mxu0
          %780 = vdwg.mxu0
          %v782 = vsel %vm707, %v706, 0
          %784 = vmatprep.subr.mxu0 0.0
          %785 = vmatpush1.msra.mxu0 %v554
          %786 = vmatprep.subr.mxu0 0.0
          %787 = vmatpush1.msra.mxu0 %v555
          %788 = vmatprep.subr.mxu0 0.0
          %789 = vmatpush1.msra.mxu0 %v556
          %790 = vmatprep.subr.mxu0 0.0
          %791 = vmatpush1.msra.mxu0 %v557
          %792 = vmatprep.subr.mxu0 0.0
          %793 = vmatpush1.msra.mxu0 0.0
          %794 = vmatprep.subr.mxu0 0.0
          %795 = vmatpush1.msra.mxu0 0.0
          %796 = vmatprep.subr.mxu0 0.0
          %797 = vmatpush1.msra.mxu0 0.0
          %798 = vmatprep.subr.mxu0 0.0
          %799 = vmatpush1.msra.mxu0 0.0
          %800 = vmatprep.subr.mxu0 0.0
          %801 = vmatpush1.msra.mxu0 0.0
          %802 = vmatprep.subr.mxu0 0.0
          %803 = vmatpush1.msra.mxu0 0.0
          %804 = vmatprep.subr.mxu0 0.0
          %805 = vmatpush1.msra.mxu0 0.0
          %806 = vmatprep.subr.mxu0 0.0
          %807 = vmatpush1.msra.mxu0 0.0
          %808 = vmatprep.subr.mxu0 0.0
          %809 = vmatpush1.msra.mxu0 0.0
          %810 = vmatprep.subr.mxu0 0.0
          %811 = vmatpush1.msra.mxu0 0.0
          %812 = vmatprep.subr.mxu0 0.0
          %813 = vmatpush1.msra.mxu0 0.0
          %814 = vmatprep.subr.mxu0 0.0
          %815 = vmatpush1.msra.mxu0 0.0
          %816 = vmatprep.subr.mxu0 0.0
          %817 = vmatpush1.msra.mxu0 0.0
          %818 = vmatprep.subr.mxu0 0.0
          %819 = vmatpush1.msra.mxu0 0.0
          %820 = vmatprep.subr.mxu0 0.0
          %821 = vmatpush1.msra.mxu0 0.0
          %822 = vmatprep.subr.mxu0 0.0
          %823 = vmatpush1.msra.mxu0 0.0
          %824 = vmatprep.subr.mxu0 0.0
          %825 = vmatpush1.msra.mxu0 0.0
          %826 = vmatprep.subr.mxu0 0.0
          %827 = vmatpush1.msra.mxu0 0.0
          %828 = vmatprep.subr.mxu0 0.0
          %829 = vmatpush1.msra.mxu0 0.0
          %830 = vmatprep.subr.mxu0 0.0
          %831 = vmatpush1.msra.mxu0 0.0
          %832 = vmatprep.subr.mxu0 0.0
          %833 = vmatpush1.msra.mxu0 0.0
          %834 = vmatprep.subr.mxu0 0.0
          %835 = vmatpush1.msra.mxu0 0.0
          %836 = vmatprep.subr.mxu0 0.0
          %837 = vmatpush1.msra.mxu0 0.0
          %838 = vmatprep.subr.mxu0 0.0
          %839 = vmatpush1.msra.mxu0 0.0
          %840 = vmatprep.subr.mxu0 0.0
          %841 = vmatpush1.msra.mxu0 0.0
          %842 = vmatprep.subr.mxu0 0.0
          %843 = vmatpush1.msra.mxu0 0.0
          %844 = vmatprep.subr.mxu0 0.0
          %845 = vmatpush1.msra.mxu0 0.0
          %846 = vmatprep.subr.mxu0 0.0
          %847 = vmatpush1.msra.mxu0 0.0
          %848 = vmatprep.mubr.f32.mxu0 0.0
          %849 = vmatmul.mubr.f32.gmra.mrb[0].mxu0 %v782
          %v850 = vpop.f32.mrb[0].mxu0
          %v851 = vadd.f32 0.0, %v850
          %v852 = vpop.f32.mrb[0].mxu0
          %853 = vdwg.mxu0
          %v854 = vld [vmem:[#allocation7] sm:$0x1]
          %v855 = vmul.f32 %v851, %v854
          %856 = vst [vmem:[%s342] sm:$0x1] %v855
          %v857 = vld [vmem:[#allocation9] sm:$0x1]
          %v858 = vmul.f32 %v778, %v855
          %v859 = vsub.f32 %v857, %v858
          %860 = vst [vmem:[%s348] sm:$0x1] %v859
        $region68: #{tpu_custom_call.1} parent=39 // pred_fallthru
          _
        %s861 = sand.u32 %s161, 1
        %s862 = scalar_lea.sflag [#allocation6], %s861
        %s863 = sand.u32 %s161, 1
        %s864 = scalar_lea.vmem [#allocation13], %s863
        %s865 = sand.u32 %s187, 1
        %s866 = scalar_lea.sflag [#allocation15], %s865
        %s867 = sand.u32 %s187, 1
        %s868 = scalar_lea.vmem [#allocation14], %s867
        // Predicated region
        $region69: #{tpu_custom_call.1} parent=39 // pred_check
          %p869 = pneg %p171
        $region70: #{tpu_custom_call.1} parent=39 // pred_check_branch
          %871 = sbr.rel (%p869) target = $region72
        $region71: #{tpu_custom_call.1} parent=39 // pred_region
          %s873 = ssub.s32 16, 16
          %874 = vsyncadd %s862, %s873
          %s875 = smul.addr %s33, 16
          %s876 = scalar_lea.hbm %s5, %s875
          %s878 = sshll.u32 %s864, 4
          %s879 = int_to_ptr.vmem [resolvable:$true] %s878
          %881 = dma.vmem_to_hbm [thread:$0]  %s879, 16, %s876, %s862
        $region72: #{tpu_custom_call.1} parent=39 // pred_fallthru
          _
        // Predicated region
        $region73: #{tpu_custom_call.1} parent=39 // pred_check
          %p882 = pneg %p197
        $region74: #{tpu_custom_call.1} parent=39 // pred_check_branch
          %884 = sbr.rel (%p882) target = $region76
        $region75: #{tpu_custom_call.1} parent=39 // pred_region
          %s886 = ssub.s32 16, 16
          %887 = vsyncadd %s866, %s886
          %s888 = smul.addr %s33, 16
          %s889 = scalar_lea.hbm %s6, %s888
          %s891 = sshll.u32 %s868, 4
          %s892 = int_to_ptr.vmem [resolvable:$true] %s891
          %894 = dma.vmem_to_hbm [thread:$0]  %s892, 16, %s889, %s866
        $region76: #{tpu_custom_call.1} parent=39 // pred_fallthru
          _
      $region40: #{tpu_custom_call.1} parent=5 // pred_fallthru
        _
      %p895 = scmp.le.s32.totalorder 2, %s24
      // Predicated region
      $region77: #{tpu_custom_call.1} parent=5 // pred_check
        %p896 = pneg %p895
      $region78: #{tpu_custom_call.1} parent=5 // pred_check_branch
        %898 = sbr.rel (%p896) target = $region80
      $region79: #{tpu_custom_call.1} parent=5 // pred_region
        %s899 = ssub.s32 %s24, 2
        // Predicated region
        $region81: #{tpu_custom_call.1} parent=79 // pred_check
          %p900 = pneg %p177
        $region82: #{tpu_custom_call.1} parent=79 // pred_check_branch
          %902 = sbr.rel (%p900) target = $region84
        $region83: #{tpu_custom_call.1} parent=79 // pred_region
          %s903 = sand.u32 %s162, 1
          %s904 = scalar_lea.sflag [#allocation6], %s903
          %s905 = sand.u32 %s162, 1
          %s906 = scalar_lea.vmem [#allocation13], %s905
          %907 = dma.done %s904, 16
        $region84: #{tpu_custom_call.1} parent=79 // pred_fallthru
          _
        // Predicated region
        $region85: #{tpu_custom_call.1} parent=79 // pred_check
          %p908 = pneg %p203
        $region86: #{tpu_custom_call.1} parent=79 // pred_check_branch
          %910 = sbr.rel (%p908) target = $region88
        $region87: #{tpu_custom_call.1} parent=79 // pred_region
          %s911 = sand.u32 %s188, 1
          %s912 = scalar_lea.sflag [#allocation15], %s911
          %s913 = sand.u32 %s188, 1
          %s914 = scalar_lea.vmem [#allocation14], %s913
          %915 = dma.done %s912, 16
        $region88: #{tpu_custom_call.1} parent=79 // pred_fallthru
          _
      $region80: #{tpu_custom_call.1} parent=5 // pred_fallthru
        _
    $region6: #{tpu_custom_call.1} parent=1 // loop_footer
      %s28 = sadd.s32 1, %s24
    $region7: #{tpu_custom_call.1} parent=1 // loop_footer_branch
      %23 = sbr.rel target = $region3
    $region8: #{tpu_custom_call.1} parent=1 // loop_exit
      _
    %916 = vsyncpa [#allocation5], 1
    %s917 = scalar_lea.sflag [#allocation5], 1
    %918 = vsyncpa %s917, 1
    %919 = vsyncpa [#allocation8], 1
    %920 = vsyncpa [#allocation11], 1
    %921 = vsyncpa [#allocation6], 1
    %s922 = scalar_lea.sflag [#allocation6], 1
    %923 = vsyncpa %s922, 1
    %924 = vsyncpa [#allocation15], 1
    %s925 = scalar_lea.sflag [#allocation15], 1
    %926 = vsyncpa %s925, 1

</llo_original>
